<compile_context>
chip_gen: v5e
topology: v5e:2x2
jax: 0.10.0
libtpu: 0.0.40
codegen_flags: <defaults>
</compile_context>

<pallas_src>
import functools
from itertools import combinations

import numpy as np
import jax
import jax.numpy as jnp
from jax.experimental import pallas as pl
from jax.experimental.pallas import tpu as pltpu

MARGIN = 0.1
BLOCK_T = 2048                       # max triplets per grid step (multiple of 128)
VMEM_LIMIT = 32 * 1024 * 1024        # safe on v5e/v6e/v7x; raises v5e's 16 MiB default


# ------------------------------ Pallas kernels ------------------------------ #
def _gram_kernel(e_ref, g_ref, sq_ref):
    """Per-embedding Gram matrix and row squared norms.

    e_ref  : (1, N, D) input dtype (f32 or bf16)
    g_ref  : (1, N, N) f32   G = E @ E^T  (f32 accumulate on the MXU)
    sq_ref : (1, N, 1) f32   per-row squared norms
    """
    e = e_ref[0]                                                     # (N, D)
    g_ref[0] = jax.lax.dot_general(
        e, e, (((1,), (1,)), ((), ())), preferred_element_type=jnp.float32)
    ef = e.astype(jnp.float32)
    sq_ref[0] = jnp.sum(ef * ef, axis=1, keepdims=True)              # (N, 1)


def _stable_softplus(x):
    # Numerically stable softplus using only exp/log (matches F.softplus).
    return jnp.maximum(x, 0.0) + jnp.log(1.0 + jnp.exp(-jnp.abs(x)))


def _triplet_pair_loss_kernel(idx_ref, g_ref, sq_ref, o_ref, *, soft_margin):
    """Per-triplet losses for BOTH embeddings from precomputed Gram matrices.

    idx_ref : (1, 3, BT) int32  rows = (anchor, positive, negative) indices
    g_ref   : (2, N, N)  f32    Gram matrices, VMEM-resident across the grid
    sq_ref  : (2, N, 1)  f32    row squared norms
    o_ref   : (1, 2, BT) f32    per-triplet losses, row e = embedding e
    """
    n = g_ref.shape[1]
    bt = idx_ref.shape[2]

    idx = idx_ref[0]                                                 # (3, BT)
    row_ids = jax.lax.broadcasted_iota(jnp.int32, (n, bt), 0)
    oh_a = (row_ids == idx[0:1, :]).astype(jnp.float32)              # (N, BT)
    oh_pn = ((row_ids == idx[1:2, :]).astype(jnp.float32)
             - (row_ids == idx[2:3, :]).astype(jnp.float32))         # (N, BT)

    rows = []
    for e in range(2):
        g = g_ref[e]                                                 # (N, N)
        sq = sq_ref[e]                                               # (N, 1)
        # t[r, c] = G[r, p_c] - G[r, n_c]   (one MXU matmul; p/n selection)
        t = jnp.dot(g, oh_pn, preferred_element_type=jnp.float32)    # (N, BT)
        # diff = d(a,p) - d(a,n) = (sq[p] - sq[n]) - 2 * (G[a,p] - G[a,n])
        # anchor-row selection = elementwise mask * t + sublane reduce (XLU).
        diff = jnp.sum(sq * oh_pn - 2.0 * (oh_a * t), axis=0, keepdims=True)
        if soft_margin:
            rows.append(_stable_softplus(diff))
        else:
            rows.append(jnp.maximum(diff + MARGIN, 0.0))
    o_ref[0] = jnp.concatenate(rows, axis=0)                         # (2, BT)


# ------------------------------ Pallas wrappers ----------------------------- #
def _as_mxu_dtype(x):
    x = jnp.asarray(x)
    if x.dtype in (jnp.bfloat16, jnp.float32):
        return x
    return x.astype(jnp.float32)


def triplet_pair_losses_pallas(emb1, emb2, triplets, soft_margin=False):
    """Per-triplet losses for emb1 and emb2.

    emb1, emb2 : (N, D) float (f32 or bf16)
    triplets   : (T, 3) int  (anchor, positive, negative) row indices
    returns    : ((T,) f32, (T,) f32)
    """
    e1 = _as_mxu_dtype(emb1)
    e2 = _as_mxu_dtype(emb2).astype(e1.dtype)
    N, D = int(e1.shape[0]), int(e1.shape[1])
    T = int(np.asarray(triplets).shape[0])
    if T == 0:
        z = jnp.zeros((0,), jnp.float32)
        return z, z

    # ---- Kernel 1: Gram matrices + squared norms (grid over the 2 networks) --
    E = jnp.stack([e1, e2], axis=0)                                  # (2, N, D)
    G, SQ = pl.pallas_call(
        _gram_kernel,
        out_shape=(jax.ShapeDtypeStruct((2, N, N), jnp.float32),
                   jax.ShapeDtypeStruct((2, N, 1), jnp.float32)),
        grid_spec=pltpu.PrefetchScalarGridSpec(
            num_scalar_prefetch=0,
            grid=(2,),
            in_specs=[pl.BlockSpec((1, N, D), lambda i: (i, 0, 0))],
            out_specs=[pl.BlockSpec((1, N, N), lambda i: (i, 0, 0)),
                       pl.BlockSpec((1, N, 1), lambda i: (i, 0, 0))],
        ),
        compiler_params=pltpu.CompilerParams(
            dimension_semantics=("parallel",),
            vmem_limit_bytes=VMEM_LIMIT),
        cost_estimate=pl.CostEstimate(
            flops=int(2 * (2 * N * N * D + 2 * N * D)),
            transcendentals=0,
            bytes_accessed=int(2 * N * D * e1.dtype.itemsize
                               + 2 * N * (N + 1) * 4)),
    )(E)

    # ---- Kernel 2: per-triplet losses, streaming lane-dense index blocks -----
    # Shrink the block for small T so (where possible) >= 2 grid blocks exist
    # and both v7x TensorCores get work.
    half = (T + 1) // 2
    bt = min(BLOCK_T, max(128, ((half + 127) // 128) * 128))
    T_pad = ((T + bt - 1) // bt) * bt
    num_blocks = T_pad // bt

    # Pad only the cheap int32 index array; padded rows are (0, 0, 0) triplets
    # whose losses are sliced away below, so they never contaminate results.
    tri = jnp.pad(jnp.asarray(triplets, dtype=jnp.int32), ((0, T_pad - T), (0, 0)))
    idx = tri.T.reshape(3, num_blocks, bt).transpose(1, 0, 2)        # (nb, 3, bt)

    kernel = functools.partial(_triplet_pair_loss_kernel, soft_margin=soft_margin)
    out = pl.pallas_call(
        kernel,
        out_shape=jax.ShapeDtypeStruct((num_blocks, 2, bt), jnp.float32),
        grid_spec=pltpu.PrefetchScalarGridSpec(
            num_scalar_prefetch=0,
            grid=(num_blocks,),
            in_specs=[
                pl.BlockSpec((1, 3, bt), lambda i: (i, 0, 0)),   # streams per step
                pl.BlockSpec((2, N, N), lambda i: (0, 0, 0)),    # VMEM-resident
                pl.BlockSpec((2, N, 1), lambda i: (0, 0, 0)),    # VMEM-resident
            ],
            out_specs=pl.BlockSpec((1, 2, bt), lambda i: (i, 0, 0)),
        ),
        compiler_params=pltpu.CompilerParams(
            dimension_semantics=("parallel",),
            vmem_limit_bytes=VMEM_LIMIT),
        cost_estimate=pl.CostEstimate(
            flops=int(num_blocks * 2 * (2 * N * N * bt + 6 * N * bt)),
            transcendentals=int(2 * T_pad) if soft_margin else 0,
            bytes_accessed=int(5 * T_pad * 4 + 2 * N * (N + 1) * 4)),
    )(idx, G, SQ)

    losses = out.transpose(1, 0, 2).reshape(2, T_pad)[:, :T]
    return losses[0], losses[1]


# ------------------------- AllTripletSelector glue -------------------------- #
def get_all_triplets(labels_np):
    """Enumerate every (anchor, positive, negative) triplet, as in
    AllTripletSelector.get_triplets (host-side numpy, data-dependent shape)."""
    labels_np = np.asarray(labels_np)
    triplets = []
    for label in sorted(set(labels_np.tolist())):
        label_mask = labels_np == label
        label_indices = np.where(label_mask)[0]
        if len(label_indices) < 2:
            continue
        negative_indices = np.where(np.logical_not(label_mask))[0]
        anchor_positives = list(combinations(label_indices, 2))
        triplets += [
            [ap[0], ap[1], neg]
            for ap in anchor_positives
            for neg in negative_indices
        ]
    if len(triplets) == 0:
        return np.zeros((0, 3), dtype=np.int32)
    return np.array(triplets, dtype=np.int32)


# ------------------------------- Module port --------------------------------- #
class CoTeachingTripletLoss:
    def __init__(self, self_taught=False, soft_margin=False, hard_mining=False,
                 size_average=True):
        self.self_taught = self_taught
        self.soft_margin = soft_margin
        self.hard_mining = hard_mining
        self.size_average = size_average

    def __call__(self, emb1, emb2, targets_np, keep_rate):
        all_triplet_np = get_all_triplets(np.asarray(targets_np))
        T = int(all_triplet_np.shape[0])

        # Single fused Pallas path for both embeddings.
        loss_1, loss_2 = triplet_pair_losses_pallas(emb1, emb2, all_triplet_np,
                                                    self.soft_margin)

        if keep_rate < 1.0:
            ind_1_sorted = jnp.argsort(loss_1)
            ind_2_sorted = jnp.argsort(loss_2)
            if self.hard_mining:
                ind_1_sorted = ind_1_sorted[::-1]
                ind_2_sorted = ind_2_sorted[::-1]
            num_keep = int(keep_rate * T)
            if self.self_taught:
                ind_1_update = ind_1_sorted[:num_keep]
                ind_2_update = ind_2_sorted[:num_keep]
            else:
                ind_1_update = ind_2_sorted[:num_keep]
                ind_2_update = ind_1_sorted[:num_keep]
            # The reference recomputes _triplet_loss(emb1, all_triplet[ind_2_update])
            # and _triplet_loss(emb2, all_triplet[ind_1_update]); same triplet rows,
            # same math -> gather the already-computed per-triplet losses.  This
            # mirrors the PyTorch code exactly (including its double index swap
            # for self_taught=False).
            loss_1_update = loss_1[ind_2_update]
            loss_2_update = loss_2[ind_1_update]
        elif self.self_taught:
            loss_1_update, loss_2_update = loss_1, loss_2
        else:
            loss_1_update, loss_2_update = loss_2, loss_1

        if self.size_average:
            return (loss_1_update.mean(), loss_2_update.mean(),
                    loss_1.mean(), loss_2.mean())
        else:
            return (loss_1_update.sum(), loss_2_update.sum(),
                    loss_1.sum(), loss_2.sum())


# ---------------------------- pure-JAX reference ----------------------------- #
def _triplet_loss_ref(emb, triplets, soft_margin):
    triplets = jnp.asarray(triplets)
    a = emb[triplets[:, 0]]
    p = emb[triplets[:, 1]]
    n = emb[triplets[:, 2]]
    d_ap = jnp.sum((a - p) ** 2, axis=1)
    d_an = jnp.sum((a - n) ** 2, axis=1)
    if soft_margin:
        return jax.nn.softplus(d_ap - d_an)
    return jnp.maximum(d_ap - d_an + MARGIN, 0.0)


if __name__ == "__main__":
    key = jax.random.PRNGKey(0)
    k1, k2 = jax.random.split(key)

    batch, dim = 8, 32
    emb1 = jax.random.normal(k1, (batch, dim), dtype=jnp.float32)
    emb2 = jax.random.normal(k2, (batch, dim), dtype=jnp.float32)
    targets = np.array([0, 0, 0, 0, 1, 1, 1, 1], dtype=np.int32)
    keep_rate = 0.7

    crit = CoTeachingTripletLoss(self_taught=False, soft_margin=False,
                                 hard_mining=False, size_average=True)
    out = crit(emb1, emb2, targets, keep_rate)
    out = jax.block_until_ready(out)

    # Sanity check of the kernel hot path against a pure-JAX reference.
    # (Gram-form distances reassociate the f32 sums, hence the modest tolerance.)
    tri = get_all_triplets(targets)
    for sm in (False, True):
        l1, l2 = triplet_pair_losses_pallas(emb1, emb2, tri, sm)
        l1, l2 = jax.block_until_ready((l1, l2))
        np.testing.assert_allclose(np.asarray(l1),
                                   np.asarray(_triplet_loss_ref(emb1, tri, sm)),
                                   rtol=5e-3, atol=5e-3)
        np.testing.assert_allclose(np.asarray(l2),
                                   np.asarray(_triplet_loss_ref(emb2, tri, sm)),
                                   rtol=5e-3, atol=5e-3)

    print("KERNEL_OK")
</pallas_src>

<mosaic_0001>
module attributes {stable_mosaic.version = 11 : i64} {
  func.func @_gram_kernel(%arg0: i32, %arg1: memref<1x8x32xf32, #tpu.memory_space<vmem>>, %arg2: memref<1x8x8xf32, #tpu.memory_space<vmem>>, %arg3: memref<1x8x1xf32, #tpu.memory_space<vmem>>) attributes {dimension_semantics = [#tpu.dimension_semantics<parallel>], iteration_bounds = array<i64: 2>, scalar_prefetch = 0 : i64, scratch_operands = 0 : i64, tpu.core_type = #tpu.core_type<tc>, window_params = [{transform_indices = @transform_0, window_bounds = array<i64: 1, 8, 32>}, {transform_indices = @transform_1, window_bounds = array<i64: 1, 8, 8>}, {transform_indices = @transform_2, window_bounds = array<i64: 1, 8, 1>}]} {
    %c0 = arith.constant 0 : index
    %c0_0 = arith.constant 0 : index
    %c0_1 = arith.constant 0 : index
    %0 = vector.load %arg1[%c0, %c0_0, %c0_1] : memref<1x8x32xf32, #tpu.memory_space<vmem>>, vector<1x8x32xf32>
    %1 = vector.shape_cast %0 : vector<1x8x32xf32> to vector<8x32xf32>
    %cst = arith.constant dense<0.000000e+00> : vector<8x8xf32>
    %2 = tpu.matmul %1, %1, %cst {dimension_numbers = #tpu.dot_dimension_numbers<[1], [1], [0], [0], [0, 0, 1, 0], [], []>} : vector<8x32xf32>, vector<8x32xf32>, vector<8x8xf32> -> vector<8x8xf32>
    %c0_2 = arith.constant 0 : index
    %c0_3 = arith.constant 0 : index
    %c0_4 = arith.constant 0 : index
    %3 = vector.load %arg2[%c0_2, %c0_3, %c0_4] : memref<1x8x8xf32, #tpu.memory_space<vmem>>, vector<1x8x8xf32>
    %4 = vector.shape_cast %3 : vector<1x8x8xf32> to vector<8x8xf32>
    %5 = vector.shape_cast %2 : vector<8x8xf32> to vector<1x8x8xf32>
    tpu.vector_store %arg2[%c0_2, %c0_3, %c0_4], %5 {strides = array<i32>} : memref<1x8x8xf32, #tpu.memory_space<vmem>>, vector<1x8x8xf32>,
    %6 = arith.mulf %1, %1 : vector<8x32xf32>
    %cst_5 = arith.constant dense<0.000000e+00> : vector<8xf32>
    %7 = vector.multi_reduction <add>, %6, %cst_5 [1] : vector<8x32xf32> to vector<8xf32>
    %8 = vector.shape_cast %7 : vector<8xf32> to vector<8x1xf32>
    %c0_6 = arith.constant 0 : index
    %c0_7 = arith.constant 0 : index
    %c0_8 = arith.constant 0 : index
    %9 = vector.load %arg3[%c0_6, %c0_7, %c0_8] : memref<1x8x1xf32, #tpu.memory_space<vmem>>, vector<1x8x1xf32>
    %10 = vector.shape_cast %9 : vector<1x8x1xf32> to vector<8x1xf32>
    %11 = vector.shape_cast %8 : vector<8x1xf32> to vector<1x8x1xf32>
    tpu.vector_store %arg3[%c0_6, %c0_7, %c0_8], %11 {strides = array<i32>} : memref<1x8x1xf32, #tpu.memory_space<vmem>>, vector<1x8x1xf32>,
    return
  }
  func.func @transform_0(%arg0: i32) -> (i32, i32, i32) {
    %c0_i32 = arith.constant 0 : i32
    %c0_i32_0 = arith.constant 0 : i32
    %c0_i32_1 = arith.constant 0 : i32
    return %arg0, %c0_i32, %c0_i32_0 : i32, i32, i32
  }
  func.func @transform_1(%arg0: i32) -> (i32, i32, i32) {
    %c0_i32 = arith.constant 0 : i32
    %c0_i32_0 = arith.constant 0 : i32
    %c0_i32_1 = arith.constant 0 : i32
    return %arg0, %c0_i32, %c0_i32_0 : i32, i32, i32
  }
  func.func @transform_2(%arg0: i32) -> (i32, i32, i32) {
    %c0_i32 = arith.constant 0 : i32
    %c0_i32_0 = arith.constant 0 : i32
    %c0_i32_1 = arith.constant 0 : i32
    return %arg0, %c0_i32, %c0_i32_0 : i32, i32, i32
  }
}

</mosaic_0001>

<llo_original>
// kernel: tpu_custom_call.1
$region0: #{tpu_custom_call.1}
  #allocation0 [shape = 'u32[]', space=smem, size = 0x4, offset = 0x4, fixed_abs, tag = 'smem constant byte address 0x4 - core index']
  #allocation1 [shape = 'u32[72,128]{1,0:T(1,128)}', space=vmem, size = 0x9000, scoped, tag = 'internal scratch']
  %s0 = inlined_call_operand.hbm [shape: f32[2,8,32], index: 0, kind: input, shape index: {}]
  %s1 = inlined_call_operand.hbm [shape: f32[2,8,8], index: 1, kind: output, shape index: {0}]
  %s2 = inlined_call_operand.vmem [shape: f32[2,8,1], index: 2, kind: output, shape index: {1}]
  %3 = xla_tuple %s1, %s2
  %s4 = sld [smem:[#allocation0]]
  $region49: #{tpu_custom_call.1} parent=0
    _
  %s6 = ssub.s32 1, %s4
  %s7 = scalar_select 0, %s6, %s4
  $region1: #{tpu_custom_call.1} parent=0
    #allocation2 [shape = 'u8[8192]{0}', space=vmem, size = 0x2000, scoped, tag = 'input window, operand 0']
    #allocation3 [shape = 's32[2]{0}', space=sflag, size = 0x8, scoped, tag = 'scoped memory for tpu_custom_call.1']
    #allocation4 [shape = 's32[2]{0}', space=sflag, size = 0x8, scoped, tag = 'scoped memory for tpu_custom_call.1']
    #allocation5 [shape = 'u8[8192]{0}', space=vmem, size = 0x2000, scoped, tag = 'output window, operand 0']
    %8 = vsyncpa [#allocation3], 0
    %s9 = scalar_lea.sflag [#allocation3], 1
    %10 = vsyncpa %s9, 0
    %11 = vsyncpa [#allocation4], 0
    %s12 = scalar_lea.sflag [#allocation4], 1
    %13 = vsyncpa %s12, 0
    loop: start=0, step=1, limit=4
    $region2: #{tpu_custom_call.1} parent=1 // loop_pre_header
      _
    $region3: #{tpu_custom_call.1} parent=1 // loop_header
      %s15 = sphi 0, %s19
      %p16 = scmp.ge.s32.totalorder %s15, 4
      %s25 = sphi 0, %s27
      %s28 = sphi 0, %s25
      %s29 = sphi 0, %s28
      %s45 = sphi 0, %s29
      %s51 = sphi 0, %s53
      %s54 = sphi 0, %s51
      %s55 = sphi 0, %s54
      %s71 = sphi 0, %s55
      %s77 = sphi 0, %s79
      %s80 = sphi 0, %s77
      %s81 = sphi 0, %s80
      %s97 = sphi 0, %s81
    $region4: #{tpu_custom_call.1} parent=1 // loop_header_branch
      %18 = sbr.rel (%p16) target = $region8
    $region5: #{tpu_custom_call.1} parent=1 // loop_body
      %s20 = ssub.s32 %s15, 1
      %s21 = ssub.s32 %s15, 2
      %s22 = sadd.s32 %s15, 1
      %s23 = ssub.s32 %s15, %s22
      %p24 = scmp.eq.s32.totalorder %s23, 0
      %s26 = sadd.s32 %s25, 1
      %s27 = scalar_select %p24, %s25, %s26
      %p30 = pneg %p24
      %p31 = scmp.eq.s32.totalorder %s15, 1
      %p32 = por %p30, %p31
      %p33 = scmp.ne.s32.totalorder %s25, %s28
      %p34 = scmp.eq.s32.totalorder %s15, 0
      %p35 = por %p33, %p34
      %p36 = scmp.ne.s32.totalorder %s25, %s28
      %p37 = scmp.eq.s32.totalorder %s20, 1
      %p38 = por %p36, %p37
      %p39 = scmp.ne.s32.totalorder %s28, %s29
      %p40 = scmp.eq.s32.totalorder %s20, 0
      %p41 = por %p39, %p40
      %p42 = scmp.ne.s32.totalorder %s28, %s29
      %p43 = scmp.eq.s32.totalorder %s21, 1
      %p44 = por %p42, %p43
      %p46 = scmp.ne.s32.totalorder %s29, %s45
      %p47 = scmp.eq.s32.totalorder %s21, 0
      %p48 = por %p46, %p47
      %s49 = ssub.s32 %s15, %s22
      %p50 = scmp.eq.s32.totalorder %s49, 0
      %s52 = sadd.s32 %s51, 1
      %s53 = scalar_select %p50, %s51, %s52
      %p56 = pneg %p50
      %p57 = scmp.eq.s32.totalorder %s15, 1
      %p58 = por %p56, %p57
      %p59 = scmp.ne.s32.totalorder %s51, %s54
      %p60 = scmp.eq.s32.totalorder %s15, 0
      %p61 = por %p59, %p60
      %p62 = scmp.ne.s32.totalorder %s51, %s54
      %p63 = scmp.eq.s32.totalorder %s20, 1
      %p64 = por %p62, %p63
      %p65 = scmp.ne.s32.totalorder %s54, %s55
      %p66 = scmp.eq.s32.totalorder %s20, 0
      %p67 = por %p65, %p66
      %p68 = scmp.ne.s32.totalorder %s54, %s55
      %p69 = scmp.eq.s32.totalorder %s21, 1
      %p70 = por %p68, %p69
      %p72 = scmp.ne.s32.totalorder %s55, %s71
      %p73 = scmp.eq.s32.totalorder %s21, 0
      %p74 = por %p72, %p73
      %s75 = ssub.s32 %s15, %s22
      %p76 = scmp.eq.s32.totalorder %s75, 0
      %s78 = sadd.s32 %s77, 1
      %s79 = scalar_select %p76, %s77, %s78
      %p82 = pneg %p76
      %p83 = scmp.eq.s32.totalorder %s15, 1
      %p84 = por %p82, %p83
      %p85 = scmp.ne.s32.totalorder %s77, %s80
      %p86 = scmp.eq.s32.totalorder %s15, 0
      %p87 = por %p85, %p86
      %p88 = scmp.ne.s32.totalorder %s77, %s80
      %p89 = scmp.eq.s32.totalorder %s20, 1
      %p90 = por %p88, %p89
      %p91 = scmp.ne.s32.totalorder %s80, %s81
      %p92 = scmp.eq.s32.totalorder %s20, 0
      %p93 = por %p91, %p92
      %p94 = scmp.ne.s32.totalorder %s80, %s81
      %p95 = scmp.eq.s32.totalorder %s21, 1
      %p96 = por %p94, %p95
      %p98 = scmp.ne.s32.totalorder %s81, %s97
      %p99 = scmp.eq.s32.totalorder %s21, 0
      %p100 = por %p98, %p99
      %p101 = scmp.le.s32.totalorder 1, %s15
      %p102 = scmp.lt.s32.totalorder %s15, 3
      %p103 = pnand %p101, %p102
      %p104 = pneg %p103
      // Predicated region
      $region9: #{tpu_custom_call.1} parent=5 // pred_check
        _
      $region10: #{tpu_custom_call.1} parent=5 // pred_check_branch
        %106 = sbr.rel (%p103) target = $region12
      $region11: #{tpu_custom_call.1} parent=5 // pred_region
        %s107 = ssub.s32 %s15, 1
      $region12: #{tpu_custom_call.1} parent=5 // pred_fallthru
        _
      %p108 = scmp.lt.s32.totalorder %s15, 2
      // Predicated region
      $region13: #{tpu_custom_call.1} parent=5 // pred_check
        %p109 = pneg %p108
      $region14: #{tpu_custom_call.1} parent=5 // pred_check_branch
        %111 = sbr.rel (%p109) target = $region16
      $region15: #{tpu_custom_call.1} parent=5 // pred_region
        // Predicated region
        $region17: #{tpu_custom_call.1} parent=15 // pred_check
          %p112 = pneg %p35
        $region18: #{tpu_custom_call.1} parent=15 // pred_check_branch
          %114 = sbr.rel (%p112) target = $region20
        $region19: #{tpu_custom_call.1} parent=15 // pred_region
          %s115 = sand.u32 %s25, 1
          %s116 = scalar_lea.sflag [#allocation3], %s115
          %s117 = sand.u32 %s25, 1
          %s118 = smul.addr %s117, 8
          %s119 = scalar_lea.vmem [#allocation2], %s118
          %121 = vsyncadd %s116, 0
          %s122 = smul.addr %s15, 8
          %s123 = scalar_lea.hbm %s0, %s122
          %s125 = sshll.u32 %s123, 4
          %s126 = int_to_ptr.hbm [resolvable:$true] %s125
          %s127 = sshll.u32 %s119, 4
          %s128 = int_to_ptr.vmem [resolvable:$true] %s127
          %130 = dma.hbm_to_vmem [thread:$0]  %s126, 128, %s128, %s116
        $region20: #{tpu_custom_call.1} parent=15 // pred_fallthru
          _
      $region16: #{tpu_custom_call.1} parent=5 // pred_fallthru
        _
      %p131 = scmp.le.s32.totalorder 1, %s15
      %p132 = scmp.lt.s32.totalorder %s15, 3
      %p133 = pnand %p131, %p132
      %p134 = pneg %p133
      // Predicated region
      $region21: #{tpu_custom_call.1} parent=5 // pred_check
        _
      $region22: #{tpu_custom_call.1} parent=5 // pred_check_branch
        %136 = sbr.rel (%p133) target = $region24
      $region23: #{tpu_custom_call.1} parent=5 // pred_region
        %s137 = ssub.s32 %s15, 1
        %s138 = sand.u32 %s28, 1
        %s139 = scalar_lea.sflag [#allocation3], %s138
        %s140 = sand.u32 %s28, 1
        %s141 = smul.addr %s140, 8
        %s142 = scalar_lea.vmem [#allocation2], %s141
        // Predicated region
        $region25: #{tpu_custom_call.1} parent=23 // pred_check
          %p143 = pneg %p41
        $region26: #{tpu_custom_call.1} parent=23 // pred_check_branch
          %145 = sbr.rel (%p143) target = $region28
        $region27: #{tpu_custom_call.1} parent=23 // pred_region
          %147 = dma.done %s139, 128
        $region28: #{tpu_custom_call.1} parent=23 // pred_fallthru
          _
        %s148 = sand.u32 %s28, 1
        %s149 = scalar_lea.sflag [#allocation3], %s148
        %s150 = sand.u32 %s28, 1
        %s151 = smul.addr %s150, 8
        %s152 = scalar_lea.vmem [#allocation2], %s151
        %p153 = pneg %p41
        %p154 = pneg %p38
        %p155 = pneg %p67
        %p156 = pneg %p64
        %s157 = sand.u32 %s54, 1
        %s158 = scalar_lea.sflag [#allocation4], %s157
        %s159 = sand.u32 %s54, 1
        %s160 = smul.addr %s159, 8
        %s161 = scalar_lea.vmem [#allocation5], %s160
        %p162 = pneg %p93
        %p163 = pneg %p90
        %p164 = scmp.lt.s32.totalorder %s20, 1
        %s165 = scalar_select %p164, %s20, 1
        %s166 = smul.addr %s165, 8
        %s167 = scalar_lea.vmem %s2, %s166
        %p168 = scmp.lt.s32.totalorder %s20, 1
        %s169 = scalar_select %p168, %s20, 1
        %s170 = smul.addr %s169, 8
        %s171 = scalar_lea.vmem %s2, %s170
        %v172 = vld [vmem:[%s142] sm:$0xff]
        %vm173 = vcmask 261120
        %v175 = vsel %vm173, %v172, 0
        %177 = vmatpush.xpose.msra.mxu0 0.0
        %178 = vmatpush.xpose.msra.mxu0 0.0
        %179 = vmatpush.xpose.msra.mxu0 0.0
        %180 = vmatpush.xpose.msra.mxu0 0.0
        %181 = vmatpush.xpose.msra.mxu0 0.0
        %182 = vmatpush.xpose.msra.mxu0 0.0
        %183 = vmatpush.xpose.msra.mxu0 0.0
        %184 = vmatpush.xpose.msra.mxu0 0.0
        %185 = vmatpush.xpose.msra.mxu0 0.0
        %186 = vmatpush.xpose.msra.mxu0 0.0
        %187 = vmatpush.xpose.msra.mxu0 0.0
        %188 = vmatpush.xpose.msra.mxu0 0.0
        %189 = vmatpush.xpose.msra.mxu0 0.0
        %190 = vmatpush.xpose.msra.mxu0 0.0
        %191 = vmatpush.xpose.msra.mxu0 0.0
        %192 = vmatpush.xpose.msra.mxu0 %v175
        %193 = vmatmul.f32.gmra.mxu0 %v175
        %v194 = vpop.f32.mrf.mxu0
        %v195 = vadd.f32 0.0, %v194
        %196 = vdwg.mxu0
        %vm197 = vcmask 64512
        %198 = vst.msk [vmem:[%s161] sm:$0xff] %vm197, %v195
        %v199 = vmul.f32 %v172, %v172
        %v200 = vsel %vm173, %v199, 0.0
        %201 = vadd.xlane.f32.xlu0 %v200
        %v202 = vpop.xlane.xlu0 %201
        %vm203 = vcmask 7168
        %204 = vst.msk [vmem:[%s171] sm:$0xff] %vm203, %v202
        %s205 = sand.u32 %s54, 1
        %s206 = scalar_lea.sflag [#allocation4], %s205
        %s207 = sand.u32 %s54, 1
        %s208 = smul.addr %s207, 8
        %s209 = scalar_lea.vmem [#allocation5], %s208
        %p210 = scmp.lt.s32.totalorder %s20, 1
        %s211 = scalar_select %p210, %s20, 1
        %s212 = smul.addr %s211, 8
        %s213 = scalar_lea.vmem %s2, %s212
        // Predicated region
        $region29: #{tpu_custom_call.1} parent=23 // pred_check
          %p214 = pneg %p64
        $region30: #{tpu_custom_call.1} parent=23 // pred_check_branch
          %216 = sbr.rel (%p214) target = $region32
        $region31: #{tpu_custom_call.1} parent=23 // pred_region
          %218 = vsyncadd %s206, 0
          %s219 = smul.addr %s20, 8
          %s220 = scalar_lea.hbm %s1, %s219
          %s222 = sshll.u32 %s209, 4
          %s223 = int_to_ptr.vmem [resolvable:$true] %s222
          %s224 = sshll.u32 %s220, 4
          %s225 = int_to_ptr.hbm [resolvable:$true] %s224
          %227 = dma.vmem_to_hbm [thread:$0]  %s223, 128, %s225, %s206
        $region32: #{tpu_custom_call.1} parent=23 // pred_fallthru
          _
        // Predicated region
        $region33: #{tpu_custom_call.1} parent=23 // pred_check
          %p228 = pneg %p90
        $region34: #{tpu_custom_call.1} parent=23 // pred_check_branch
          %230 = sbr.rel (%p228) target = $region36
        $region35: #{tpu_custom_call.1} parent=23 // pred_region
          _
        $region36: #{tpu_custom_call.1} parent=23 // pred_fallthru
          _
      $region24: #{tpu_custom_call.1} parent=5 // pred_fallthru
        _
      %p231 = scmp.le.s32.totalorder 2, %s15
      // Predicated region
      $region37: #{tpu_custom_call.1} parent=5 // pred_check
        %p232 = pneg %p231
      $region38: #{tpu_custom_call.1} parent=5 // pred_check_branch
        %234 = sbr.rel (%p232) target = $region40
      $region39: #{tpu_custom_call.1} parent=5 // pred_region
        %s235 = ssub.s32 %s15, 2
        // Predicated region
        $region41: #{tpu_custom_call.1} parent=39 // pred_check
          %p236 = pneg %p70
        $region42: #{tpu_custom_call.1} parent=39 // pred_check_branch
          %238 = sbr.rel (%p236) target = $region44
        $region43: #{tpu_custom_call.1} parent=39 // pred_region
          %s239 = sand.u32 %s55, 1
          %s240 = scalar_lea.sflag [#allocation4], %s239
          %s241 = sand.u32 %s55, 1
          %s242 = smul.addr %s241, 8
          %s243 = scalar_lea.vmem [#allocation5], %s242
          %245 = dma.done %s240, 128
        $region44: #{tpu_custom_call.1} parent=39 // pred_fallthru
          _
        // Predicated region
        $region45: #{tpu_custom_call.1} parent=39 // pred_check
          %p246 = pneg %p96
        $region46: #{tpu_custom_call.1} parent=39 // pred_check_branch
          %248 = sbr.rel (%p246) target = $region48
        $region47: #{tpu_custom_call.1} parent=39 // pred_region
          %p249 = scmp.lt.s32.totalorder %s21, 1
          %s250 = scalar_select %p249, %s21, 1
          %s251 = smul.addr %s250, 8
          %s252 = scalar_lea.vmem %s2, %s251
        $region48: #{tpu_custom_call.1} parent=39 // pred_fallthru
          _
      $region40: #{tpu_custom_call.1} parent=5 // pred_fallthru
        _
    $region6: #{tpu_custom_call.1} parent=1 // loop_footer
      %s19 = sadd.s32 1, %s15
    $region7: #{tpu_custom_call.1} parent=1 // loop_footer_branch
      %14 = sbr.rel target = $region3
    $region8: #{tpu_custom_call.1} parent=1 // loop_exit
      _
    %253 = vsyncpa [#allocation3], 1
    %s254 = scalar_lea.sflag [#allocation3], 1
    %255 = vsyncpa %s254, 1
    %256 = vsyncpa [#allocation4], 1
    %s257 = scalar_lea.sflag [#allocation4], 1
    %258 = vsyncpa %s257, 1

</llo_original>
